<compile_context>
chip_gen: v5e
topology: v5e:2x2
jax: 0.10.0
libtpu: 0.0.40
codegen_flags: <defaults>
</compile_context>

<pallas_src>
import functools

import jax
import jax.numpy as jnp
from jax.experimental import pallas as pl
from jax.experimental.pallas import tpu as pltpu

LN_EPS = 1e-12
_SQRT_HALF = 0.7071067811865476
_SUBLANE = 8


def _erf(x):
    # Abramowitz & Stegun 7.1.26 polynomial erf (max abs error ~1.5e-7 with an exact
    # reciprocal). The divide is replaced by the EUP approximate reciprocal
    # (~2^-12 relative error), which uses an otherwise-idle issue slot; the extra
    # error is far below the bf16 matmul noise floor.
    a1, a2, a3, a4, a5 = (0.254829592, -0.284496736, 1.421413741,
                          -1.453152027, 1.061405429)
    p = 0.3275911
    ax = jnp.abs(x)
    t = pl.reciprocal(1.0 + p * ax, approx=True)
    poly = ((((a5 * t + a4) * t + a3) * t + a2) * t + a1) * t
    y = 1.0 - poly * jnp.exp(-ax * ax)
    return jnp.where(x >= 0.0, y, -y)


def _gelu_exact(x):
    return 0.5 * x * (1.0 + _erf(x * _SQRT_HALF))


def _adapter_bert_output_kernel(
    x_ref,        # (TM, D_in)  hidden_states block (native dtype)
    res_ref,      # (TM, H)     input_tensor block (residual, native dtype)
    wd_ref,       # (D_in, H)   dense weight (matmul dtype)
    bd_ref,       # (1, H)      dense bias (f32)
    wdn_ref,      # (H, A)      adapter down-projection weight
    bdn_ref,      # (1, A)      adapter down-projection bias (f32)
    wup_ref,      # (A, H)      adapter up-projection weight
    bup_ref,      # (1, H)      adapter up-projection bias (f32)
    gamma_ref,    # (1, H)      LayerNorm weight (f32)
    beta_ref,     # (1, H)      LayerNorm bias (f32)
    o_ref,        # (TM, H)     output block
):
    mm_dtype = wd_ref.dtype

    # base.dense: cast the activation block to the matmul dtype *in-kernel* (VPU),
    # MXU matmul with f32 accumulation.
    h = jnp.dot(x_ref[...].astype(mm_dtype), wd_ref[...],
                preferred_element_type=jnp.float32)
    h = h + bd_ref[...]

    # base.dropout -> identity in eval mode.

    # adapter_forward: up(gelu(down(h))) + h  (matmuls in mm_dtype, epilogue f32)
    down = jnp.dot(h.astype(mm_dtype), wdn_ref[...],
                   preferred_element_type=jnp.float32) + bdn_ref[...]
    act = _gelu_exact(down)
    up = jnp.dot(act.astype(mm_dtype), wup_ref[...],
                 preferred_element_type=jnp.float32)
    h = h + up + bup_ref[...]   # fold up-proj bias into the residual-add chain

    # residual add + LayerNorm over the last dim, all in f32.
    y = h + res_ref[...].astype(jnp.float32)
    mean = jnp.mean(y, axis=-1, keepdims=True)
    var = jnp.mean(jnp.square(y - mean), axis=-1, keepdims=True)
    normed = (y - mean) * jax.lax.rsqrt(var + LN_EPS)
    o_ref[...] = (normed * gamma_ref[...] + beta_ref[...]).astype(o_ref.dtype)


def _round_up(n, m):
    return (n + m - 1) // m * m


def _vmem_capacity_bytes():
    try:
        return int(pltpu.get_tpu_info().vmem_capacity_bytes)
    except Exception:
        return 64 * 1024 * 1024  # conservative fallback: v7x per-TC VMEM


def _usable_vmem_bytes():
    cap = _vmem_capacity_bytes()
    # Never claim the full physical VMEM: leave >=16 MiB (and >=1/8th) headroom for
    # Mosaic's internal scratch.  v7x: 64 MiB -> 48 MiB usable; v6e: 128 -> 112 MiB.
    return max(24 * 1024 * 1024, min(cap - 16 * 1024 * 1024, cap * 7 // 8))


def _vmem_need_bytes(br, d_in, h, a, x_b, r_b, o_b, w_b):
    need = 2 * br * d_in * x_b                  # hidden_states window (double-buffered)
    need += 2 * br * h * r_b                    # residual window
    need += 2 * br * h * o_b                    # output window
    # Grid-invariant weights (constant index_map): the pipeliner re-uses the window
    # across steps; budget 2x conservatively in case it keeps two buffers.
    need += 2 * w_b * (d_in * h + 2 * h * a)
    need += 2 * 4 * (4 * h + a)                 # biases / LN params (f32)
    need += br * d_in * w_b                     # in-kernel bf16 cast of the x block
    need += 6 * br * h * 4 + 3 * br * a * 4     # f32 intermediates headroom
    return need


def _choose_block_rows(requested, n_rows, d_in, h, a, x_b, r_b, o_b, w_b,
                       vmem_budget):
    # Don't run a mostly-padding tile on tiny inputs ...
    br = min(requested, _round_up(n_rows, _SUBLANE))
    # ... and keep >=2 grid steps when possible so both v7x TensorCores get work.
    if n_rows > _SUBLANE:
        br = min(br, _round_up(pl.cdiv(n_rows, 2), _SUBLANE))
    br = max(br, _SUBLANE)
    # Shrink until the tile budget fits the usable VMEM.
    while br > _SUBLANE and _vmem_need_bytes(
            br, d_in, h, a, x_b, r_b, o_b, w_b) > vmem_budget:
        br = max(_SUBLANE, _round_up(br // 2, _SUBLANE))
    return br


def prepare_params(params, matmul_dtype=jnp.bfloat16):
    """One-time cast/reshape of weights & norm params (call once, not per step)."""
    h = params["w_dense"].shape[1]
    a = params["w_down"].shape[1]
    return {
        "w_dense": jnp.asarray(params["w_dense"], matmul_dtype),
        "w_down": jnp.asarray(params["w_down"], matmul_dtype),
        "w_up": jnp.asarray(params["w_up"], matmul_dtype),
        "b_dense": jnp.asarray(params["b_dense"], jnp.float32).reshape(1, h),
        "b_down": jnp.asarray(params["b_down"], jnp.float32).reshape(1, a),
        "b_up": jnp.asarray(params["b_up"], jnp.float32).reshape(1, h),
        "ln_gamma": jnp.asarray(params["ln_gamma"], jnp.float32).reshape(1, h),
        "ln_beta": jnp.asarray(params["ln_beta"], jnp.float32).reshape(1, h),
    }


@functools.partial(jax.jit, static_argnames=("block_rows",))
def adapter_bert_output(hidden_states, input_tensor, prepared, *,
                        block_rows=512):
    """hidden_states: (B, S, D_in), input_tensor: (B, S, H) -> (B, S, H)."""
    B, S, D_in = hidden_states.shape
    H = input_tensor.shape[-1]
    A = prepared["w_down"].shape[1]
    n_rows = B * S

    # No wrapper-side pad or cast: activations stream at native dtype; a ragged last
    # M block (if any) is masked by Pallas.  Rows are independent and LayerNorm is
    # per-row, so partial tiles are safe (no cross-row reductions).
    x2d = hidden_states.reshape(n_rows, D_in)
    r2d = input_tensor.reshape(n_rows, H)
    out_dtype = hidden_states.dtype

    x_b = jnp.dtype(x2d.dtype).itemsize
    r_b = jnp.dtype(r2d.dtype).itemsize
    o_b = jnp.dtype(out_dtype).itemsize
    w_b = jnp.dtype(prepared["w_dense"].dtype).itemsize

    vmem_budget = _usable_vmem_bytes()
    br = _choose_block_rows(block_rows, n_rows, D_in, H, A,
                            x_b, r_b, o_b, w_b, vmem_budget)
    grid = (pl.cdiv(n_rows, br),)

    full = lambda shape: pl.BlockSpec(shape, lambda i: (0, 0))

    out2d = pl.pallas_call(
        _adapter_bert_output_kernel,
        out_shape=jax.ShapeDtypeStruct((n_rows, H), out_dtype),
        grid_spec=pltpu.PrefetchScalarGridSpec(
            num_scalar_prefetch=0,
            grid=grid,
            in_specs=[
                pl.BlockSpec((br, D_in), lambda i: (i, 0)),   # hidden_states
                pl.BlockSpec((br, H), lambda i: (i, 0)),      # input_tensor (residual)
                full((D_in, H)),                              # dense W (resident)
                full((1, H)),                                 # dense b
                full((H, A)),                                 # down W
                full((1, A)),                                 # down b
                full((A, H)),                                 # up W
                full((1, H)),                                 # up b
                full((1, H)),                                 # ln gamma
                full((1, H)),                                 # ln beta
            ],
            out_specs=pl.BlockSpec((br, H), lambda i: (i, 0)),
        ),
        compiler_params=pltpu.CompilerParams(
            dimension_semantics=("parallel",),
            vmem_limit_bytes=int(vmem_budget),
        ),
    )(x2d, r2d, prepared["w_dense"], prepared["b_dense"],
      prepared["w_down"], prepared["b_down"], prepared["w_up"],
      prepared["b_up"], prepared["ln_gamma"], prepared["ln_beta"])

    return out2d.reshape(B, S, H)


def _reference(hidden_states, input_tensor, params, matmul_dtype=jnp.bfloat16):
    """Pure-JAX reference with the same mixed-precision policy as the kernel."""
    md = matmul_dtype
    f32 = jnp.float32
    h = jnp.dot(hidden_states.astype(md), params["w_dense"].astype(md),
                preferred_element_type=f32) + params["b_dense"]
    down = jnp.dot(h.astype(md), params["w_down"].astype(md),
                   preferred_element_type=f32) + params["b_down"]
    act = jax.nn.gelu(down, approximate=False)   # exact erf GELU (torch default)
    up = jnp.dot(act.astype(md), params["w_up"].astype(md),
                 preferred_element_type=f32)
    h = h + up + params["b_up"]
    y = h + input_tensor.astype(f32)
    mean = jnp.mean(y, axis=-1, keepdims=True)
    var = jnp.mean(jnp.square(y - mean), axis=-1, keepdims=True)
    return (y - mean) * jax.lax.rsqrt(var + LN_EPS) * params["ln_gamma"] + params["ln_beta"]


def init_params(key, d_in, hidden, adapter):
    ks = jax.random.split(key, 6)
    scale = 0.02
    return {
        # stored as (in, out) == transpose of torch.nn.Linear.weight
        "w_dense": scale * jax.random.normal(ks[0], (d_in, hidden), jnp.float32),
        "b_dense": scale * jax.random.normal(ks[1], (hidden,), jnp.float32),
        "w_down": scale * jax.random.normal(ks[2], (hidden, adapter), jnp.float32),
        "b_down": jnp.zeros((adapter,), jnp.float32),
        "w_up": scale * jax.random.normal(ks[3], (adapter, hidden), jnp.float32),
        "b_up": jnp.zeros((hidden,), jnp.float32),
        "ln_gamma": jnp.ones((hidden,), jnp.float32),
        "ln_beta": jnp.zeros((hidden,), jnp.float32),
    }


if __name__ == "__main__":
    key = jax.random.PRNGKey(0)
    B, S = 2, 8
    D_IN = 256      # intermediate size feeding BertOutput (small, lane-aligned)
    HIDDEN = 128    # multiple of 128 -> lane-dense output stores
    ADAPTER = 128   # adapter bottleneck at full MXU lane width

    kp, kx, kr = jax.random.split(key, 3)
    params = init_params(kp, D_IN, HIDDEN, ADAPTER)
    prepared = prepare_params(params)     # one-time weight cast, outside the step
    hidden_states = jax.random.normal(kx, (B, S, D_IN), jnp.float32)
    input_tensor = jax.random.normal(kr, (B, S, HIDDEN), jnp.float32)

    out = adapter_bert_output(hidden_states, input_tensor, prepared)
    out = jax.block_until_ready(out)

    ref = _reference(hidden_states, input_tensor, params)
    assert out.shape == (B, S, HIDDEN)
    assert jnp.allclose(out, ref, atol=2e-2, rtol=2e-2), "mismatch vs reference"
    print("KERNEL_OK")
</pallas_src>

<mosaic_0001>
module attributes {stable_mosaic.version = 11 : i64} {
  func.func @_adapter_bert_output_kernel(%arg0: i32, %arg1: memref<8x256xf32, #tpu.memory_space<vmem>>, %arg2: memref<8x128xf32, #tpu.memory_space<vmem>>, %arg3: memref<256x128xbf16, #tpu.memory_space<vmem>>, %arg4: memref<1x128xf32, #tpu.memory_space<vmem>>, %arg5: memref<128x128xbf16, #tpu.memory_space<vmem>>, %arg6: memref<1x128xf32, #tpu.memory_space<vmem>>, %arg7: memref<128x128xbf16, #tpu.memory_space<vmem>>, %arg8: memref<1x128xf32, #tpu.memory_space<vmem>>, %arg9: memref<1x128xf32, #tpu.memory_space<vmem>>, %arg10: memref<1x128xf32, #tpu.memory_space<vmem>>, %arg11: memref<8x128xf32, #tpu.memory_space<vmem>>) attributes {dimension_semantics = [#tpu.dimension_semantics<parallel>], iteration_bounds = array<i64: 2>, scalar_prefetch = 0 : i64, scratch_operands = 0 : i64, tpu.core_type = #tpu.core_type<tc>, window_params = [{transform_indices = @transform_0, window_bounds = array<i64: 8, 256>}, {transform_indices = @transform_1, window_bounds = array<i64: 8, 128>}, {pipeline_mode = #tpu.pipeline_mode<synchronous>, transform_indices = @transform_2, window_bounds = array<i64: 256, 128>}, {pipeline_mode = #tpu.pipeline_mode<synchronous>, transform_indices = @transform_3, window_bounds = array<i64: 1, 128>}, {pipeline_mode = #tpu.pipeline_mode<synchronous>, transform_indices = @transform_4, window_bounds = array<i64: 128, 128>}, {pipeline_mode = #tpu.pipeline_mode<synchronous>, transform_indices = @transform_5, window_bounds = array<i64: 1, 128>}, {pipeline_mode = #tpu.pipeline_mode<synchronous>, transform_indices = @transform_6, window_bounds = array<i64: 128, 128>}, {pipeline_mode = #tpu.pipeline_mode<synchronous>, transform_indices = @transform_7, window_bounds = array<i64: 1, 128>}, {pipeline_mode = #tpu.pipeline_mode<synchronous>, transform_indices = @transform_8, window_bounds = array<i64: 1, 128>}, {pipeline_mode = #tpu.pipeline_mode<synchronous>, transform_indices = @transform_9, window_bounds = array<i64: 1, 128>}, {transform_indices = @transform_10, window_bounds = array<i64: 8, 128>}]} {
    %c0 = arith.constant 0 : index
    %c0_0 = arith.constant 0 : index
    %0 = vector.load %arg1[%c0, %c0_0] : memref<8x256xf32, #tpu.memory_space<vmem>>, vector<8x256xf32>
    %1 = arith.truncf %0 : vector<8x256xf32> to vector<8x256xbf16>
    %c0_1 = arith.constant 0 : index
    %c0_2 = arith.constant 0 : index
    %2 = vector.load %arg3[%c0_1, %c0_2] : memref<256x128xbf16, #tpu.memory_space<vmem>>, vector<256x128xbf16>
    %cst = arith.constant dense<0.000000e+00> : vector<8x128xf32>
    %3 = tpu.matmul %1, %2, %cst {dimension_numbers = #tpu.dot_dimension_numbers<[1], [0], [0], [1], [0, 0, 1, 1], [], []>} : vector<8x256xbf16>, vector<256x128xbf16>, vector<8x128xf32> -> vector<8x128xf32>
    %c0_3 = arith.constant 0 : index
    %c0_4 = arith.constant 0 : index
    %4 = vector.load %arg4[%c0_3, %c0_4] : memref<1x128xf32, #tpu.memory_space<vmem>>, vector<1x128xf32>
    %5 = vector.broadcast %4 : vector<1x128xf32> to vector<8x128xf32>
    %6 = arith.addf %3, %5 : vector<8x128xf32>
    %7 = arith.truncf %6 : vector<8x128xf32> to vector<8x128xbf16>
    %c0_5 = arith.constant 0 : index
    %c0_6 = arith.constant 0 : index
    %8 = vector.load %arg5[%c0_5, %c0_6] : memref<128x128xbf16, #tpu.memory_space<vmem>>, vector<128x128xbf16>
    %cst_7 = arith.constant dense<0.000000e+00> : vector<8x128xf32>
    %9 = tpu.matmul %7, %8, %cst_7 {dimension_numbers = #tpu.dot_dimension_numbers<[1], [0], [0], [1], [0, 0, 1, 1], [], []>} : vector<8x128xbf16>, vector<128x128xbf16>, vector<8x128xf32> -> vector<8x128xf32>
    %c0_8 = arith.constant 0 : index
    %c0_9 = arith.constant 0 : index
    %10 = vector.load %arg6[%c0_8, %c0_9] : memref<1x128xf32, #tpu.memory_space<vmem>>, vector<1x128xf32>
    %11 = vector.broadcast %10 : vector<1x128xf32> to vector<8x128xf32>
    %12 = arith.addf %9, %11 : vector<8x128xf32>
    %cst_10 = arith.constant 5.000000e-01 : f32
    %13 = vector.broadcast %cst_10 : f32 to vector<8x128xf32>
    %14 = arith.mulf %13, %12 : vector<8x128xf32>
    %cst_11 = arith.constant 0.707106769 : f32
    %15 = vector.broadcast %cst_11 : f32 to vector<8x128xf32>
    %16 = arith.mulf %12, %15 : vector<8x128xf32>
    %17 = math.absf %16 : vector<8x128xf32>
    %cst_12 = arith.constant 0.327591091 : f32
    %18 = vector.broadcast %cst_12 : f32 to vector<8x128xf32>
    %19 = arith.mulf %18, %17 : vector<8x128xf32>
    %cst_13 = arith.constant 1.000000e+00 : f32
    %20 = vector.broadcast %cst_13 : f32 to vector<8x128xf32>
    %21 = arith.addf %20, %19 : vector<8x128xf32>
    %22 = tpu.reciprocal %21 {approx = true} : vector<8x128xf32> -> vector<8x128xf32>
    %cst_14 = arith.constant 1.06140542 : f32
    %23 = vector.broadcast %cst_14 : f32 to vector<8x128xf32>
    %24 = arith.mulf %23, %22 : vector<8x128xf32>
    %cst_15 = arith.constant -1.45315206 : f32
    %25 = vector.broadcast %cst_15 : f32 to vector<8x128xf32>
    %26 = arith.addf %24, %25 : vector<8x128xf32>
    %27 = arith.mulf %26, %22 : vector<8x128xf32>
    %cst_16 = arith.constant 1.42141378 : f32
    %28 = vector.broadcast %cst_16 : f32 to vector<8x128xf32>
    %29 = arith.addf %27, %28 : vector<8x128xf32>
    %30 = arith.mulf %29, %22 : vector<8x128xf32>
    %cst_17 = arith.constant -0.284496725 : f32
    %31 = vector.broadcast %cst_17 : f32 to vector<8x128xf32>
    %32 = arith.addf %30, %31 : vector<8x128xf32>
    %33 = arith.mulf %32, %22 : vector<8x128xf32>
    %cst_18 = arith.constant 0.254829586 : f32
    %34 = vector.broadcast %cst_18 : f32 to vector<8x128xf32>
    %35 = arith.addf %33, %34 : vector<8x128xf32>
    %36 = arith.mulf %35, %22 : vector<8x128xf32>
    %cst_19 = arith.constant 0.000000e+00 : f32
    %37 = vector.broadcast %cst_19 : f32 to vector<8x128xf32>
    %38 = arith.subf %37, %17 : vector<8x128xf32>
    %39 = arith.mulf %38, %17 : vector<8x128xf32>
    %40 = math.exp %39 : vector<8x128xf32>
    %41 = arith.mulf %36, %40 : vector<8x128xf32>
    %cst_20 = arith.constant 1.000000e+00 : f32
    %42 = vector.broadcast %cst_20 : f32 to vector<8x128xf32>
    %43 = arith.subf %42, %41 : vector<8x128xf32>
    %cst_21 = arith.constant 0.000000e+00 : f32
    %44 = vector.broadcast %cst_21 : f32 to vector<8x128xf32>
    %45 = arith.cmpf oge, %16, %44 : vector<8x128xf32>
    %cst_22 = arith.constant 0.000000e+00 : f32
    %46 = vector.broadcast %cst_22 : f32 to vector<8x128xf32>
    %47 = arith.subf %46, %43 : vector<8x128xf32>
    %48 = arith.select %45, %43, %47 : vector<8x128xi1>, vector<8x128xf32>
    %cst_23 = arith.constant 1.000000e+00 : f32
    %49 = vector.broadcast %cst_23 : f32 to vector<8x128xf32>
    %50 = arith.addf %49, %48 : vector<8x128xf32>
    %51 = arith.mulf %14, %50 : vector<8x128xf32>
    %52 = arith.truncf %51 : vector<8x128xf32> to vector<8x128xbf16>
    %c0_24 = arith.constant 0 : index
    %c0_25 = arith.constant 0 : index
    %53 = vector.load %arg7[%c0_24, %c0_25] : memref<128x128xbf16, #tpu.memory_space<vmem>>, vector<128x128xbf16>
    %cst_26 = arith.constant dense<0.000000e+00> : vector<8x128xf32>
    %54 = tpu.matmul %52, %53, %cst_26 {dimension_numbers = #tpu.dot_dimension_numbers<[1], [0], [0], [1], [0, 0, 1, 1], [], []>} : vector<8x128xbf16>, vector<128x128xbf16>, vector<8x128xf32> -> vector<8x128xf32>
    %55 = arith.addf %6, %54 : vector<8x128xf32>
    %c0_27 = arith.constant 0 : index
    %c0_28 = arith.constant 0 : index
    %56 = vector.load %arg8[%c0_27, %c0_28] : memref<1x128xf32, #tpu.memory_space<vmem>>, vector<1x128xf32>
    %57 = vector.broadcast %56 : vector<1x128xf32> to vector<8x128xf32>
    %58 = arith.addf %55, %57 : vector<8x128xf32>
    %c0_29 = arith.constant 0 : index
    %c0_30 = arith.constant 0 : index
    %59 = vector.load %arg2[%c0_29, %c0_30] : memref<8x128xf32, #tpu.memory_space<vmem>>, vector<8x128xf32>
    %60 = arith.addf %58, %59 : vector<8x128xf32>
    %cst_31 = arith.constant dense<0.000000e+00> : vector<8xf32>
    %61 = vector.multi_reduction <add>, %60, %cst_31 [1] : vector<8x128xf32> to vector<8xf32>
    %62 = vector.shape_cast %61 : vector<8xf32> to vector<8x1xf32>
    %cst_32 = arith.constant 1.280000e+02 : f32
    %63 = vector.broadcast %cst_32 : f32 to vector<8x1xf32>
    %64 = arith.divf %62, %63 : vector<8x1xf32>
    %65 = vector.broadcast %64 : vector<8x1xf32> to vector<8x128xf32>
    %66 = arith.subf %60, %65 : vector<8x128xf32>
    %67 = arith.mulf %66, %66 : vector<8x128xf32>
    %cst_33 = arith.constant dense<0.000000e+00> : vector<8xf32>
    %68 = vector.multi_reduction <add>, %67, %cst_33 [1] : vector<8x128xf32> to vector<8xf32>
    %69 = vector.shape_cast %68 : vector<8xf32> to vector<8x1xf32>
    %cst_34 = arith.constant 1.280000e+02 : f32
    %70 = vector.broadcast %cst_34 : f32 to vector<8x1xf32>
    %71 = arith.divf %69, %70 : vector<8x1xf32>
    %72 = vector.broadcast %64 : vector<8x1xf32> to vector<8x128xf32>
    %73 = arith.subf %60, %72 : vector<8x128xf32>
    %cst_35 = arith.constant 9.99999996E-13 : f32
    %74 = vector.broadcast %cst_35 : f32 to vector<8x1xf32>
    %75 = arith.addf %71, %74 : vector<8x1xf32>
    %76 = math.rsqrt %75 : vector<8x1xf32>
    %77 = vector.broadcast %76 : vector<8x1xf32> to vector<8x128xf32>
    %78 = arith.mulf %73, %77 : vector<8x128xf32>
    %c0_36 = arith.constant 0 : index
    %c0_37 = arith.constant 0 : index
    %79 = vector.load %arg9[%c0_36, %c0_37] : memref<1x128xf32, #tpu.memory_space<vmem>>, vector<1x128xf32>
    %80 = vector.broadcast %79 : vector<1x128xf32> to vector<8x128xf32>
    %81 = arith.mulf %78, %80 : vector<8x128xf32>
    %c0_38 = arith.constant 0 : index
    %c0_39 = arith.constant 0 : index
    %82 = vector.load %arg10[%c0_38, %c0_39] : memref<1x128xf32, #tpu.memory_space<vmem>>, vector<1x128xf32>
    %83 = vector.broadcast %82 : vector<1x128xf32> to vector<8x128xf32>
    %84 = arith.addf %81, %83 : vector<8x128xf32>
    %c0_40 = arith.constant 0 : index
    %c0_41 = arith.constant 0 : index
    %85 = vector.load %arg11[%c0_40, %c0_41] : memref<8x128xf32, #tpu.memory_space<vmem>>, vector<8x128xf32>
    tpu.vector_store %arg11[%c0_40, %c0_41], %84 {strides = array<i32>} : memref<8x128xf32, #tpu.memory_space<vmem>>, vector<8x128xf32>,
    return
  }
  func.func @transform_0(%arg0: i32) -> (i32, i32) {
    %c0_i32 = arith.constant 0 : i32
    %c0_i32_0 = arith.constant 0 : i32
    return %arg0, %c0_i32 : i32, i32
  }
  func.func @transform_1(%arg0: i32) -> (i32, i32) {
    %c0_i32 = arith.constant 0 : i32
    %c0_i32_0 = arith.constant 0 : i32
    return %arg0, %c0_i32 : i32, i32
  }
  func.func @transform_2(%arg0: i32) -> (i32, i32) {
    %c0_i32 = arith.constant 0 : i32
    %c0_i32_0 = arith.constant 0 : i32
    %c0_i32_1 = arith.constant 0 : i32
    return %c0_i32, %c0_i32_0 : i32, i32
  }
  func.func @transform_3(%arg0: i32) -> (i32, i32) {
    %c0_i32 = arith.constant 0 : i32
    %c0_i32_0 = arith.constant 0 : i32
    %c0_i32_1 = arith.constant 0 : i32
    return %c0_i32, %c0_i32_0 : i32, i32
  }
  func.func @transform_4(%arg0: i32) -> (i32, i32) {
    %c0_i32 = arith.constant 0 : i32
    %c0_i32_0 = arith.constant 0 : i32
    %c0_i32_1 = arith.constant 0 : i32
    return %c0_i32, %c0_i32_0 : i32, i32
  }
  func.func @transform_5(%arg0: i32) -> (i32, i32) {
    %c0_i32 = arith.constant 0 : i32
    %c0_i32_0 = arith.constant 0 : i32
    %c0_i32_1 = arith.constant 0 : i32
    return %c0_i32, %c0_i32_0 : i32, i32
  }
  func.func @transform_6(%arg0: i32) -> (i32, i32) {
    %c0_i32 = arith.constant 0 : i32
    %c0_i32_0 = arith.constant 0 : i32
    %c0_i32_1 = arith.constant 0 : i32
    return %c0_i32, %c0_i32_0 : i32, i32
  }
  func.func @transform_7(%arg0: i32) -> (i32, i32) {
    %c0_i32 = arith.constant 0 : i32
    %c0_i32_0 = arith.constant 0 : i32
    %c0_i32_1 = arith.constant 0 : i32
    return %c0_i32, %c0_i32_0 : i32, i32
  }
  func.func @transform_8(%arg0: i32) -> (i32, i32) {
    %c0_i32 = arith.constant 0 : i32
    %c0_i32_0 = arith.constant 0 : i32
    %c0_i32_1 = arith.constant 0 : i32
    return %c0_i32, %c0_i32_0 : i32, i32
  }
  func.func @transform_9(%arg0: i32) -> (i32, i32) {
    %c0_i32 = arith.constant 0 : i32
    %c0_i32_0 = arith.constant 0 : i32
    %c0_i32_1 = arith.constant 0 : i32
    return %c0_i32, %c0_i32_0 : i32, i32
  }
  func.func @transform_10(%arg0: i32) -> (i32, i32) {
    %c0_i32 = arith.constant 0 : i32
    %c0_i32_0 = arith.constant 0 : i32
    return %arg0, %c0_i32 : i32, i32
  }
}

</mosaic_0001>

<llo_original>
// kernel: adapter_bert_output.1
$region0: #{adapter_bert_output.1}
  #allocation0 [shape = 'u32[]', space=smem, size = 0x4, offset = 0x4, fixed_abs, tag = 'smem constant byte address 0x4 - core index']
  #allocation1 [shape = 'u32[72,128]{1,0:T(1,128)}', space=vmem, size = 0x9000, scoped, tag = 'internal scratch']
  %s0 = inlined_call_operand.hbm [shape: f32[16,256], index: 0, kind: input, shape index: {}]
  %s1 = inlined_call_operand.hbm [shape: f32[16,128], index: 1, kind: input, shape index: {}]
  %s2 = inlined_call_operand.hbm [shape: bf16[256,128], index: 2, kind: input, shape index: {}]
  %s3 = inlined_call_operand.vmem [shape: f32[1,128], index: 3, kind: input, shape index: {}]
  %s4 = inlined_call_operand.hbm [shape: bf16[128,128], index: 4, kind: input, shape index: {}]
  %s5 = inlined_call_operand.vmem [shape: f32[1,128], index: 5, kind: input, shape index: {}]
  %s6 = inlined_call_operand.hbm [shape: bf16[128,128], index: 6, kind: input, shape index: {}]
  %s7 = inlined_call_operand.vmem [shape: f32[1,128], index: 7, kind: input, shape index: {}]
  %s8 = inlined_call_operand.vmem [shape: f32[1,128], index: 8, kind: input, shape index: {}]
  %s9 = inlined_call_operand.vmem [shape: f32[1,128], index: 9, kind: input, shape index: {}]
  %s10 = inlined_call_operand.hbm [shape: f32[16,128], index: 10, kind: output, shape index: {}]
  %s11 = sld [smem:[#allocation0]]
  $region93: #{adapter_bert_output.1} parent=0
    _
  %s13 = ssub.s32 1, %s11
  %s14 = scalar_select 0, %s13, %s11
  $region1: #{adapter_bert_output.1} parent=0
    #allocation2 [shape = 'u8[16384]{0}', space=vmem, size = 0x4000, scoped, tag = 'input window, operand 0']
    #allocation3 [shape = 's32[2]{0}', space=sflag, size = 0x8, scoped, tag = 'scoped memory for adapter_bert_output.1']
    #allocation4 [shape = 's32[2]{0}', space=sflag, size = 0x8, scoped, tag = 'scoped memory for adapter_bert_output.1']
    #allocation5 [shape = 'u8[8192]{0}', space=vmem, size = 0x2000, scoped, tag = 'input window, operand 1']
    #allocation6 [shape = 's32[2]{0}', space=sflag, size = 0x8, scoped, tag = 'scoped memory for adapter_bert_output.1']
    #allocation7 [shape = 'u8[65536]{0}', space=vmem, size = 0x10000, scoped, tag = 'input window, operand 2, single buffered']
    #allocation8 [shape = 'u8[32768]{0}', space=vmem, size = 0x8000, scoped, tag = 'input window, operand 4, single buffered']
    #allocation9 [shape = 's32[1]{0}', space=sflag, size = 0x4, scoped, tag = 'scoped memory for adapter_bert_output.1']
    #allocation10 [shape = 'u8[32768]{0}', space=vmem, size = 0x8000, scoped, tag = 'input window, operand 6, single buffered']
    #allocation11 [shape = 'u8[8192]{0}', space=vmem, size = 0x2000, scoped, tag = 'output window, operand 0']
    %15 = vsyncpa [#allocation3], 0
    %s16 = scalar_lea.sflag [#allocation3], 1
    %17 = vsyncpa %s16, 0
    %18 = vsyncpa [#allocation6], 0
    %s19 = scalar_lea.sflag [#allocation6], 1
    %20 = vsyncpa %s19, 0
    %21 = vsyncpa [#allocation9], 0
    %22 = vsyncpa [#allocation4], 0
    %s23 = scalar_lea.sflag [#allocation4], 1
    %24 = vsyncpa %s23, 0
    loop: start=0, step=1, limit=4
    $region2: #{adapter_bert_output.1} parent=1 // loop_pre_header
      _
    $region3: #{adapter_bert_output.1} parent=1 // loop_header
      %s26 = sphi 0, %s30
      %p27 = scmp.ge.s32.totalorder %s26, 4
      %s36 = sphi 0, %s38
      %s39 = sphi 0, %s36
      %s40 = sphi 0, %s39
      %s56 = sphi 0, %s40
      %s62 = sphi 0, %s64
      %s65 = sphi 0, %s62
      %s66 = sphi 0, %s65
      %s82 = sphi 0, %s66
      %s86 = sphi 0, %s86
      %s88 = sphi 0, %s86
      %s89 = sphi 0, %s88
      %s103 = sphi 0, %s89
      %s107 = sphi 0, %s107
      %s109 = sphi 0, %s107
      %s110 = sphi 0, %s109
      %s124 = sphi 0, %s110
      %s128 = sphi 0, %s128
      %s130 = sphi 0, %s128
      %s131 = sphi 0, %s130
      %s145 = sphi 0, %s131
      %s149 = sphi 0, %s149
      %s151 = sphi 0, %s149
      %s152 = sphi 0, %s151
      %s166 = sphi 0, %s152
      %s170 = sphi 0, %s170
      %s172 = sphi 0, %s170
      %s173 = sphi 0, %s172
      %s187 = sphi 0, %s173
      %s191 = sphi 0, %s191
      %s193 = sphi 0, %s191
      %s194 = sphi 0, %s193
      %s208 = sphi 0, %s194
      %s212 = sphi 0, %s212
      %s214 = sphi 0, %s212
      %s215 = sphi 0, %s214
      %s229 = sphi 0, %s215
      %s233 = sphi 0, %s233
      %s235 = sphi 0, %s233
      %s236 = sphi 0, %s235
      %s250 = sphi 0, %s236
      %s256 = sphi 0, %s258
      %s259 = sphi 0, %s256
      %s260 = sphi 0, %s259
      %s276 = sphi 0, %s260
    $region4: #{adapter_bert_output.1} parent=1 // loop_header_branch
      %29 = sbr.rel (%p27) target = $region8
    $region5: #{adapter_bert_output.1} parent=1 // loop_body
      %s31 = ssub.s32 %s26, 1
      %s32 = ssub.s32 %s26, 2
      %s33 = sadd.s32 %s26, 1
      %s34 = ssub.s32 %s26, %s33
      %p35 = scmp.eq.s32.totalorder %s34, 0
      %s37 = sadd.s32 %s36, 1
      %s38 = scalar_select %p35, %s36, %s37
      %p41 = pneg %p35
      %p42 = scmp.eq.s32.totalorder %s26, 1
      %p43 = por %p41, %p42
      %p44 = scmp.ne.s32.totalorder %s36, %s39
      %p45 = scmp.eq.s32.totalorder %s26, 0
      %p46 = por %p44, %p45
      %p47 = scmp.ne.s32.totalorder %s36, %s39
      %p48 = scmp.eq.s32.totalorder %s31, 1
      %p49 = por %p47, %p48
      %p50 = scmp.ne.s32.totalorder %s39, %s40
      %p51 = scmp.eq.s32.totalorder %s31, 0
      %p52 = por %p50, %p51
      %p53 = scmp.ne.s32.totalorder %s39, %s40
      %p54 = scmp.eq.s32.totalorder %s32, 1
      %p55 = por %p53, %p54
      %p57 = scmp.ne.s32.totalorder %s40, %s56
      %p58 = scmp.eq.s32.totalorder %s32, 0
      %p59 = por %p57, %p58
      %s60 = ssub.s32 %s26, %s33
      %p61 = scmp.eq.s32.totalorder %s60, 0
      %s63 = sadd.s32 %s62, 1
      %s64 = scalar_select %p61, %s62, %s63
      %p67 = pneg %p61
      %p68 = scmp.eq.s32.totalorder %s26, 1
      %p69 = por %p67, %p68
      %p70 = scmp.ne.s32.totalorder %s62, %s65
      %p71 = scmp.eq.s32.totalorder %s26, 0
      %p72 = por %p70, %p71
      %p73 = scmp.ne.s32.totalorder %s62, %s65
      %p74 = scmp.eq.s32.totalorder %s31, 1
      %p75 = por %p73, %p74
      %p76 = scmp.ne.s32.totalorder %s65, %s66
      %p77 = scmp.eq.s32.totalorder %s31, 0
      %p78 = por %p76, %p77
      %p79 = scmp.ne.s32.totalorder %s65, %s66
      %p80 = scmp.eq.s32.totalorder %s32, 1
      %p81 = por %p79, %p80
      %p83 = scmp.ne.s32.totalorder %s66, %s82
      %p84 = scmp.eq.s32.totalorder %s32, 0
      %p85 = por %p83, %p84
      %s87 = sadd.s32 %s86, 1
      %p90 = scmp.eq.s32.totalorder %s26, 1
      %p91 = scmp.ne.s32.totalorder %s86, %s88
      %p92 = scmp.eq.s32.totalorder %s26, 0
      %p93 = por %p91, %p92
      %p94 = scmp.ne.s32.totalorder %s86, %s88
      %p95 = scmp.eq.s32.totalorder %s31, 1
      %p96 = por %p94, %p95
      %p97 = scmp.ne.s32.totalorder %s88, %s89
      %p98 = scmp.eq.s32.totalorder %s31, 0
      %p99 = por %p97, %p98
      %p100 = scmp.ne.s32.totalorder %s88, %s89
      %p101 = scmp.eq.s32.totalorder %s32, 1
      %p102 = por %p100, %p101
      %p104 = scmp.ne.s32.totalorder %s89, %s103
      %p105 = scmp.eq.s32.totalorder %s32, 0
      %p106 = por %p104, %p105
      %s108 = sadd.s32 %s107, 1
      %p111 = scmp.eq.s32.totalorder %s26, 1
      %p112 = scmp.ne.s32.totalorder %s107, %s109
      %p113 = scmp.eq.s32.totalorder %s26, 0
      %p114 = por %p112, %p113
      %p115 = scmp.ne.s32.totalorder %s107, %s109
      %p116 = scmp.eq.s32.totalorder %s31, 1
      %p117 = por %p115, %p116
      %p118 = scmp.ne.s32.totalorder %s109, %s110
      %p119 = scmp.eq.s32.totalorder %s31, 0
      %p120 = por %p118, %p119
      %p121 = scmp.ne.s32.totalorder %s109, %s110
      %p122 = scmp.eq.s32.totalorder %s32, 1
      %p123 = por %p121, %p122
      %p125 = scmp.ne.s32.totalorder %s110, %s124
      %p126 = scmp.eq.s32.totalorder %s32, 0
      %p127 = por %p125, %p126
      %s129 = sadd.s32 %s128, 1
      %p132 = scmp.eq.s32.totalorder %s26, 1
      %p133 = scmp.ne.s32.totalorder %s128, %s130
      %p134 = scmp.eq.s32.totalorder %s26, 0
      %p135 = por %p133, %p134
      %p136 = scmp.ne.s32.totalorder %s128, %s130
      %p137 = scmp.eq.s32.totalorder %s31, 1
      %p138 = por %p136, %p137
      %p139 = scmp.ne.s32.totalorder %s130, %s131
      %p140 = scmp.eq.s32.totalorder %s31, 0
      %p141 = por %p139, %p140
      %p142 = scmp.ne.s32.totalorder %s130, %s131
      %p143 = scmp.eq.s32.totalorder %s32, 1
      %p144 = por %p142, %p143
      %p146 = scmp.ne.s32.totalorder %s131, %s145
      %p147 = scmp.eq.s32.totalorder %s32, 0
      %p148 = por %p146, %p147
      %s150 = sadd.s32 %s149, 1
      %p153 = scmp.eq.s32.totalorder %s26, 1
      %p154 = scmp.ne.s32.totalorder %s149, %s151
      %p155 = scmp.eq.s32.totalorder %s26, 0
      %p156 = por %p154, %p155
      %p157 = scmp.ne.s32.totalorder %s149, %s151
      %p158 = scmp.eq.s32.totalorder %s31, 1
      %p159 = por %p157, %p158
      %p160 = scmp.ne.s32.totalorder %s151, %s152
      %p161 = scmp.eq.s32.totalorder %s31, 0
      %p162 = por %p160, %p161
      %p163 = scmp.ne.s32.totalorder %s151, %s152
      %p164 = scmp.eq.s32.totalorder %s32, 1
      %p165 = por %p163, %p164
      %p167 = scmp.ne.s32.totalorder %s152, %s166
      %p168 = scmp.eq.s32.totalorder %s32, 0
      %p169 = por %p167, %p168
      %s171 = sadd.s32 %s170, 1
      %p174 = scmp.eq.s32.totalorder %s26, 1
      %p175 = scmp.ne.s32.totalorder %s170, %s172
      %p176 = scmp.eq.s32.totalorder %s26, 0
      %p177 = por %p175, %p176
      %p178 = scmp.ne.s32.totalorder %s170, %s172
      %p179 = scmp.eq.s32.totalorder %s31, 1
      %p180 = por %p178, %p179
      %p181 = scmp.ne.s32.totalorder %s172, %s173
      %p182 = scmp.eq.s32.totalorder %s31, 0
      %p183 = por %p181, %p182
      %p184 = scmp.ne.s32.totalorder %s172, %s173
      %p185 = scmp.eq.s32.totalorder %s32, 1
      %p186 = por %p184, %p185
      %p188 = scmp.ne.s32.totalorder %s173, %s187
      %p189 = scmp.eq.s32.totalorder %s32, 0
      %p190 = por %p188, %p189
      %s192 = sadd.s32 %s191, 1
      %p195 = scmp.eq.s32.totalorder %s26, 1
      %p196 = scmp.ne.s32.totalorder %s191, %s193
      %p197 = scmp.eq.s32.totalorder %s26, 0
      %p198 = por %p196, %p197
      %p199 = scmp.ne.s32.totalorder %s191, %s193
      %p200 = scmp.eq.s32.totalorder %s31, 1
      %p201 = por %p199, %p200
      %p202 = scmp.ne.s32.totalorder %s193, %s194
      %p203 = scmp.eq.s32.totalorder %s31, 0
      %p204 = por %p202, %p203
      %p205 = scmp.ne.s32.totalorder %s193, %s194
      %p206 = scmp.eq.s32.totalorder %s32, 1
      %p207 = por %p205, %p206
      %p209 = scmp.ne.s32.totalorder %s194, %s208
      %p210 = scmp.eq.s32.totalorder %s32, 0
      %p211 = por %p209, %p210
      %s213 = sadd.s32 %s212, 1
      %p216 = scmp.eq.s32.totalorder %s26, 1
      %p217 = scmp.ne.s32.totalorder %s212, %s214
      %p218 = scmp.eq.s32.totalorder %s26, 0
      %p219 = por %p217, %p218
      %p220 = scmp.ne.s32.totalorder %s212, %s214
      %p221 = scmp.eq.s32.totalorder %s31, 1
      %p222 = por %p220, %p221
      %p223 = scmp.ne.s32.totalorder %s214, %s215
      %p224 = scmp.eq.s32.totalorder %s31, 0
      %p225 = por %p223, %p224
      %p226 = scmp.ne.s32.totalorder %s214, %s215
      %p227 = scmp.eq.s32.totalorder %s32, 1
      %p228 = por %p226, %p227
      %p230 = scmp.ne.s32.totalorder %s215, %s229
      %p231 = scmp.eq.s32.totalorder %s32, 0
      %p232 = por %p230, %p231
      %s234 = sadd.s32 %s233, 1
      %p237 = scmp.eq.s32.totalorder %s26, 1
      %p238 = scmp.ne.s32.totalorder %s233, %s235
      %p239 = scmp.eq.s32.totalorder %s26, 0
      %p240 = por %p238, %p239
      %p241 = scmp.ne.s32.totalorder %s233, %s235
      %p242 = scmp.eq.s32.totalorder %s31, 1
      %p243 = por %p241, %p242
      %p244 = scmp.ne.s32.totalorder %s235, %s236
      %p245 = scmp.eq.s32.totalorder %s31, 0
      %p246 = por %p244, %p245
      %p247 = scmp.ne.s32.totalorder %s235, %s236
      %p248 = scmp.eq.s32.totalorder %s32, 1
      %p249 = por %p247, %p248
      %p251 = scmp.ne.s32.totalorder %s236, %s250
      %p252 = scmp.eq.s32.totalorder %s32, 0
      %p253 = por %p251, %p252
      %s254 = ssub.s32 %s26, %s33
      %p255 = scmp.eq.s32.totalorder %s254, 0
      %s257 = sadd.s32 %s256, 1
      %s258 = scalar_select %p255, %s256, %s257
      %p261 = pneg %p255
      %p262 = scmp.eq.s32.totalorder %s26, 1
      %p263 = por %p261, %p262
      %p264 = scmp.ne.s32.totalorder %s256, %s259
      %p265 = scmp.eq.s32.totalorder %s26, 0
      %p266 = por %p264, %p265
      %p267 = scmp.ne.s32.totalorder %s256, %s259
      %p268 = scmp.eq.s32.totalorder %s31, 1
      %p269 = por %p267, %p268
      %p270 = scmp.ne.s32.totalorder %s259, %s260
      %p271 = scmp.eq.s32.totalorder %s31, 0
      %p272 = por %p270, %p271
      %p273 = scmp.ne.s32.totalorder %s259, %s260
      %p274 = scmp.eq.s32.totalorder %s32, 1
      %p275 = por %p273, %p274
      %p277 = scmp.ne.s32.totalorder %s260, %s276
      %p278 = scmp.eq.s32.totalorder %s32, 0
      %p279 = por %p277, %p278
      %p280 = scmp.le.s32.totalorder 1, %s26
      %p281 = scmp.lt.s32.totalorder %s26, 3
      %p282 = pnand %p280, %p281
      %p283 = pneg %p282
      // Predicated region
      $region9: #{adapter_bert_output.1} parent=5 // pred_check
        _
      $region10: #{adapter_bert_output.1} parent=5 // pred_check_branch
        %285 = sbr.rel (%p282) target = $region12
      $region11: #{adapter_bert_output.1} parent=5 // pred_region
        %s286 = ssub.s32 %s26, 1
        // Predicated region
        $region13: #{adapter_bert_output.1} parent=11 // pred_check
          %p287 = pneg %p99
        $region14: #{adapter_bert_output.1} parent=11 // pred_check_branch
          %289 = sbr.rel (%p287) target = $region16
        $region15: #{adapter_bert_output.1} parent=11 // pred_region
          %291 = vsyncadd [#allocation6], 0
          %s292 = sshll.u32 %s2, 4
          %s293 = int_to_ptr.hbm [resolvable:$true] %s292
          %s294 = sshll.u32 [#allocation7], 4
          %s295 = int_to_ptr.vmem [resolvable:$true] %s294
          %300 = dma.hbm_to_vmem [thread:$0]  %s293, 2048, %s295, [#allocation6], 64, 64, 4
        $region16: #{adapter_bert_output.1} parent=11 // pred_fallthru
          _
        // Predicated region
        $region17: #{adapter_bert_output.1} parent=11 // pred_check
          %p301 = pneg %p120
        $region18: #{adapter_bert_output.1} parent=11 // pred_check_branch
          %303 = sbr.rel (%p301) target = $region20
        $region19: #{adapter_bert_output.1} parent=11 // pred_region
          _
        $region20: #{adapter_bert_output.1} parent=11 // pred_fallthru
          _
        // Predicated region
        $region21: #{adapter_bert_output.1} parent=11 // pred_check
          %p304 = pneg %p141
        $region22: #{adapter_bert_output.1} parent=11 // pred_check_branch
          %306 = sbr.rel (%p304) target = $region24
        $region23: #{adapter_bert_output.1} parent=11 // pred_region
          %308 = vsyncadd [#allocation9], 0
          %s309 = sshll.u32 %s4, 4
          %s310 = int_to_ptr.hbm [resolvable:$true] %s309
          %s311 = sshll.u32 [#allocation8], 4
          %s312 = int_to_ptr.vmem [resolvable:$true] %s311
          %317 = dma.hbm_to_vmem [thread:$0]  %s310, 1024, %s312, [#allocation9], 64, 64, 4
        $region24: #{adapter_bert_output.1} parent=11 // pred_fallthru
          _
        // Predicated region
        $region25: #{adapter_bert_output.1} parent=11 // pred_check
          %p318 = pneg %p162
        $region26: #{adapter_bert_output.1} parent=11 // pred_check_branch
          %320 = sbr.rel (%p318) target = $region28
        $region27: #{adapter_bert_output.1} parent=11 // pred_region
          _
        $region28: #{adapter_bert_output.1} parent=11 // pred_fallthru
          _
        // Predicated region
        $region29: #{adapter_bert_output.1} parent=11 // pred_check
          %p321 = pneg %p183
        $region30: #{adapter_bert_output.1} parent=11 // pred_check_branch
          %323 = sbr.rel (%p321) target = $region32
        $region31: #{adapter_bert_output.1} parent=11 // pred_region
          %325 = vsyncadd [#allocation9], 0
          %s326 = sshll.u32 %s6, 4
          %s327 = int_to_ptr.hbm [resolvable:$true] %s326
          %s328 = sshll.u32 [#allocation10], 4
          %s329 = int_to_ptr.vmem [resolvable:$true] %s328
          %334 = dma.hbm_to_vmem [thread:$0]  %s327, 1024, %s329, [#allocation9], 64, 64, 4
        $region32: #{adapter_bert_output.1} parent=11 // pred_fallthru
          _
        // Predicated region
        $region33: #{adapter_bert_output.1} parent=11 // pred_check
          %p335 = pneg %p204
        $region34: #{adapter_bert_output.1} parent=11 // pred_check_branch
          %337 = sbr.rel (%p335) target = $region36
        $region35: #{adapter_bert_output.1} parent=11 // pred_region
          _
        $region36: #{adapter_bert_output.1} parent=11 // pred_fallthru
          _
        // Predicated region
        $region37: #{adapter_bert_output.1} parent=11 // pred_check
          %p338 = pneg %p225
        $region38: #{adapter_bert_output.1} parent=11 // pred_check_branch
          %340 = sbr.rel (%p338) target = $region40
        $region39: #{adapter_bert_output.1} parent=11 // pred_region
          _
        $region40: #{adapter_bert_output.1} parent=11 // pred_fallthru
          _
        // Predicated region
        $region41: #{adapter_bert_output.1} parent=11 // pred_check
          %p341 = pneg %p246
        $region42: #{adapter_bert_output.1} parent=11 // pred_check_branch
          %343 = sbr.rel (%p341) target = $region44
        $region43: #{adapter_bert_output.1} parent=11 // pred_region
          _
        $region44: #{adapter_bert_output.1} parent=11 // pred_fallthru
          _
      $region12: #{adapter_bert_output.1} parent=5 // pred_fallthru
        _
      %p344 = scmp.lt.s32.totalorder %s26, 2
      // Predicated region
      $region45: #{adapter_bert_output.1} parent=5 // pred_check
        %p345 = pneg %p344
      $region46: #{adapter_bert_output.1} parent=5 // pred_check_branch
        %347 = sbr.rel (%p345) target = $region48
      $region47: #{adapter_bert_output.1} parent=5 // pred_region
        // Predicated region
        $region49: #{adapter_bert_output.1} parent=47 // pred_check
          %p348 = pneg %p46
        $region50: #{adapter_bert_output.1} parent=47 // pred_check_branch
          %350 = sbr.rel (%p348) target = $region52
        $region51: #{adapter_bert_output.1} parent=47 // pred_region
          %s351 = sand.u32 %s36, 1
          %s352 = scalar_lea.sflag [#allocation3], %s351
          %s353 = sand.u32 %s36, 1
          %s354 = smul.addr %s353, 16
          %s355 = scalar_lea.vmem [#allocation2], %s354
          %357 = vsyncadd %s352, 0
          %s358 = smul.addr %s26, 2
          %s359 = smul.addr %s358, 8
          %s360 = scalar_lea.hbm %s0, %s359
          %s362 = sshll.u32 %s360, 4
          %s363 = int_to_ptr.hbm [resolvable:$true] %s362
          %s364 = sshll.u32 %s355, 4
          %s365 = int_to_ptr.vmem [resolvable:$true] %s364
          %367 = dma.hbm_to_vmem [thread:$0]  %s363, 256, %s365, %s352
        $region52: #{adapter_bert_output.1} parent=47 // pred_fallthru
          _
        // Predicated region
        $region53: #{adapter_bert_output.1} parent=47 // pred_check
          %p368 = pneg %p72
        $region54: #{adapter_bert_output.1} parent=47 // pred_check_branch
          %370 = sbr.rel (%p368) target = $region56
        $region55: #{adapter_bert_output.1} parent=47 // pred_region
          %s371 = sand.u32 %s26, 1
          %s372 = scalar_lea.sflag [#allocation6], %s371
          %s373 = sand.u32 %s62, 1
          %s374 = smul.addr %s373, 8
          %s375 = scalar_lea.vmem [#allocation5], %s374
          %377 = vsyncadd %s372, 0
          %s378 = smul.addr %s26, 8
          %s379 = scalar_lea.hbm %s1, %s378
          %s381 = sshll.u32 %s379, 4
          %s382 = int_to_ptr.hbm [resolvable:$true] %s381
          %s383 = sshll.u32 %s375, 4
          %s384 = int_to_ptr.vmem [resolvable:$true] %s383
          %386 = dma.hbm_to_vmem [thread:$0]  %s382, 128, %s384, %s372
        $region56: #{adapter_bert_output.1} parent=47 // pred_fallthru
          _
      $region48: #{adapter_bert_output.1} parent=5 // pred_fallthru
        _
      %p387 = scmp.le.s32.totalorder 1, %s26
      %p388 = scmp.lt.s32.totalorder %s26, 3
      %p389 = pnand %p387, %p388
      %p390 = pneg %p389
      // Predicated region
      $region57: #{adapter_bert_output.1} parent=5 // pred_check
        _
      $region58: #{adapter_bert_output.1} parent=5 // pred_check_branch
        %392 = sbr.rel (%p389) target = $region60
      $region59: #{adapter_bert_output.1} parent=5 // pred_region
        %s393 = ssub.s32 %s26, 1
        %s394 = sand.u32 %s39, 1
        %s395 = scalar_lea.sflag [#allocation3], %s394
        %s396 = sand.u32 %s39, 1
        %s397 = smul.addr %s396, 16
        %s398 = scalar_lea.vmem [#allocation2], %s397
        // Predicated region
        $region61: #{adapter_bert_output.1} parent=59 // pred_check
          %p399 = pneg %p52
        $region62: #{adapter_bert_output.1} parent=59 // pred_check_branch
          %401 = sbr.rel (%p399) target = $region64
        $region63: #{adapter_bert_output.1} parent=59 // pred_region
          %403 = dma.done %s395, 256
        $region64: #{adapter_bert_output.1} parent=59 // pred_fallthru
          _
        %s404 = sand.u32 %s31, 1
        %s405 = scalar_lea.sflag [#allocation6], %s404
        %s406 = sand.u32 %s65, 1
        %s407 = smul.addr %s406, 8
        %s408 = scalar_lea.vmem [#allocation5], %s407
        // Predicated region
        $region65: #{adapter_bert_output.1} parent=59 // pred_check
          %p409 = pneg %p78
        $region66: #{adapter_bert_output.1} parent=59 // pred_check_branch
          %411 = sbr.rel (%p409) target = $region68
        $region67: #{adapter_bert_output.1} parent=59 // pred_region
          %413 = dma.done %s405, 128
        $region68: #{adapter_bert_output.1} parent=59 // pred_fallthru
          _
        // Predicated region
        $region69: #{adapter_bert_output.1} parent=59 // pred_check
          %p414 = pneg %p99
        $region70: #{adapter_bert_output.1} parent=59 // pred_check_branch
          %416 = sbr.rel (%p414) target = $region72
        $region71: #{adapter_bert_output.1} parent=59 // pred_region
          %418 = dma.done [#allocation6], 2048
        $region72: #{adapter_bert_output.1} parent=59 // pred_fallthru
          _
        // Predicated region
        $region73: #{adapter_bert_output.1} parent=59 // pred_check
          %p419 = pneg %p141
        $region74: #{adapter_bert_output.1} parent=59 // pred_check_branch
          %421 = sbr.rel (%p419) target = $region76
        $region75: #{adapter_bert_output.1} parent=59 // pred_region
          %423 = dma.done [#allocation9], 1024
        $region76: #{adapter_bert_output.1} parent=59 // pred_fallthru
          _
        // Predicated region
        $region77: #{adapter_bert_output.1} parent=59 // pred_check
          %p424 = pneg %p183
        $region78: #{adapter_bert_output.1} parent=59 // pred_check_branch
          %426 = sbr.rel (%p424) target = $region80
        $region79: #{adapter_bert_output.1} parent=59 // pred_region
          %428 = dma.done [#allocation9], 1024
        $region80: #{adapter_bert_output.1} parent=59 // pred_fallthru
          _
        %s429 = sand.u32 %s39, 1
        %s430 = scalar_lea.sflag [#allocation3], %s429
        %s431 = sand.u32 %s39, 1
        %s432 = smul.addr %s431, 16
        %s433 = scalar_lea.vmem [#allocation2], %s432
        %p434 = pneg %p52
        %p435 = pneg %p49
        %s436 = sand.u32 %s31, 1
        %s437 = scalar_lea.sflag [#allocation6], %s436
        %s438 = sand.u32 %s65, 1
        %s439 = smul.addr %s438, 8
        %s440 = scalar_lea.vmem [#allocation5], %s439
        %p441 = pneg %p78
        %p442 = pneg %p75
        %p443 = pneg %p99
        %p444 = pneg %p96
        %p445 = pneg %p120
        %p446 = pneg %p117
        %p447 = pneg %p141
        %p448 = pneg %p138
        %p449 = pneg %p162
        %p450 = pneg %p159
        %p451 = pneg %p183
        %p452 = pneg %p180
        %p453 = pneg %p204
        %p454 = pneg %p201
        %p455 = pneg %p225
        %p456 = pneg %p222
        %p457 = pneg %p246
        %p458 = pneg %p243
        %p459 = pneg %p272
        %p460 = pneg %p269
        %s461 = sand.u32 %s259, 1
        %s462 = scalar_lea.sflag [#allocation4], %s461
        %s463 = sand.u32 %s259, 1
        %s464 = smul.addr %s463, 8
        %s465 = scalar_lea.vmem [#allocation11], %s464
        %v466 = vld [vmem:[%s398] sm:$0xff]
        %v467 = vld [vmem:[%s398 + $0x8] sm:$0xff]
        %v468 = vpack.c.bf16 %v466, %v466
        %v469 = vpack.c.bf16 %v467, %v467
        %v470 = vld [vmem:[#allocation7] sm:$0xf]
        %v471 = vld [vmem:[#allocation7 + $0x4] sm:$0xf]
        %v472 = vld [vmem:[#allocation7 + $0x8] sm:$0xf]
        %v473 = vld [vmem:[#allocation7 + $0xc] sm:$0xf]
        %v474 = vld [vmem:[#allocation7 + $0x10] sm:$0xf]
        %v475 = vld [vmem:[#allocation7 + $0x14] sm:$0xf]
        %v476 = vld [vmem:[#allocation7 + $0x18] sm:$0xf]
        %v477 = vld [vmem:[#allocation7 + $0x1c] sm:$0xf]
        %v478 = vld [vmem:[#allocation7 + $0x20] sm:$0xf]
        %v479 = vld [vmem:[#allocation7 + $0x24] sm:$0xf]
        %v480 = vld [vmem:[#allocation7 + $0x28] sm:$0xf]
        %v481 = vld [vmem:[#allocation7 + $0x2c] sm:$0xf]
        %v482 = vld [vmem:[#allocation7 + $0x30] sm:$0xf]
        %v483 = vld [vmem:[#allocation7 + $0x34] sm:$0xf]
        %v484 = vld [vmem:[#allocation7 + $0x38] sm:$0xf]
        %v485 = vld [vmem:[#allocation7 + $0x3c] sm:$0xf]
        %v486 = vld [vmem:[#allocation7 + $0x40] sm:$0xf]
        %v487 = vld [vmem:[#allocation7 + $0x44] sm:$0xf]
        %v488 = vld [vmem:[#allocation7 + $0x48] sm:$0xf]
        %v489 = vld [vmem:[#allocation7 + $0x4c] sm:$0xf]
        %v490 = vld [vmem:[#allocation7 + $0x50] sm:$0xf]
        %v491 = vld [vmem:[#allocation7 + $0x54] sm:$0xf]
        %v492 = vld [vmem:[#allocation7 + $0x58] sm:$0xf]
        %v493 = vld [vmem:[#allocation7 + $0x5c] sm:$0xf]
        %v494 = vld [vmem:[#allocation7 + $0x60] sm:$0xf]
        %v495 = vld [vmem:[#allocation7 + $0x64] sm:$0xf]
        %v496 = vld [vmem:[#allocation7 + $0x68] sm:$0xf]
        %v497 = vld [vmem:[#allocation7 + $0x6c] sm:$0xf]
        %v498 = vld [vmem:[#allocation7 + $0x70] sm:$0xf]
        %v499 = vld [vmem:[#allocation7 + $0x74] sm:$0xf]
        %v500 = vld [vmem:[#allocation7 + $0x78] sm:$0xf]
        %v501 = vld [vmem:[#allocation7 + $0x7c] sm:$0xf]
        %v502 = vld [vmem:[%s3] sm:$0x1]
        %v504 = vperm.slane %v502, 0
        %v538 = vunpack.c.l.b16 %v470
        %v539 = vunpack.c.l.b16 %v471
        %v540 = vunpack.c.l.b16 %v472
        %v541 = vunpack.c.l.b16 %v473
        %v542 = vunpack.c.l.b16 %v474
        %v543 = vunpack.c.l.b16 %v475
        %v544 = vunpack.c.l.b16 %v476
        %v545 = vunpack.c.l.b16 %v477
        %v546 = vunpack.c.l.b16 %v478
        %v547 = vunpack.c.l.b16 %v479
        %v548 = vunpack.c.l.b16 %v480
        %v549 = vunpack.c.l.b16 %v481
        %v550 = vunpack.c.l.b16 %v482
        %v551 = vunpack.c.l.b16 %v483
        %v552 = vunpack.c.l.b16 %v484
        %v553 = vunpack.c.l.b16 %v485
        %v554 = vunpack.c.l.b16 %v486
        %v555 = vunpack.c.l.b16 %v487
        %v556 = vunpack.c.l.b16 %v488
        %v557 = vunpack.c.l.b16 %v489
        %v558 = vunpack.c.l.b16 %v490
        %v559 = vunpack.c.l.b16 %v491
        %v560 = vunpack.c.l.b16 %v492
        %v561 = vunpack.c.l.b16 %v493
        %v562 = vunpack.c.l.b16 %v494
        %v563 = vunpack.c.l.b16 %v495
        %v564 = vunpack.c.l.b16 %v496
        %v565 = vunpack.c.l.b16 %v497
        %v566 = vunpack.c.l.b16 %v498
        %v567 = vunpack.c.l.b16 %v499
        %v568 = vunpack.c.l.b16 %v500
        %v569 = vunpack.c.l.b16 %v501
        %v570 = vpack.c.b16 %v539, %v538
        %v571 = vpack.c.b16 %v541, %v540
        %v572 = vpack.c.b16 %v543, %v542
        %v573 = vpack.c.b16 %v545, %v544
        %v574 = vpack.c.b16 %v547, %v546
        %v575 = vpack.c.b16 %v549, %v548
        %v576 = vpack.c.b16 %v551, %v550
        %v577 = vpack.c.b16 %v553, %v552
        %v578 = vpack.c.b16 %v555, %v554
        %v579 = vpack.c.b16 %v557, %v556
        %v580 = vpack.c.b16 %v559, %v558
        %v581 = vpack.c.b16 %v561, %v560
        %v582 = vpack.c.b16 %v563, %v562
        %v583 = vpack.c.b16 %v565, %v564
        %v584 = vpack.c.b16 %v567, %v566
        %v585 = vpack.c.b16 %v569, %v568
        %602 = vmatpush.bf16.msra.mxu0 %v577
        %603 = vmatpush.bf16.msra.mxu0 %v576
        %604 = vmatpush.bf16.msra.mxu0 %v575
        %605 = vmatpush.bf16.msra.mxu0 %v574
        %606 = vmatpush.bf16.msra.mxu0 %v573
        %607 = vmatpush.bf16.msra.mxu0 %v572
        %608 = vmatpush.bf16.msra.mxu0 %v571
        %609 = vmatpush.bf16.msra.mxu0 %v570
        %610 = vmatmul.bf16.gmra.mxu0 %v468
        %v611 = vpop.f32.mrf.mxu0
        %v612 = vadd.f32 %v504, %v611
        %v613 = vpop.f32.mrf.mxu0
        %614 = vdwg.mxu0
        %615 = vmatpush.bf16.msra.mxu0 %v585
        %616 = vmatpush.bf16.msra.mxu0 %v584
        %617 = vmatpush.bf16.msra.mxu0 %v583
        %618 = vmatpush.bf16.msra.mxu0 %v582
        %619 = vmatpush.bf16.msra.mxu0 %v581
        %620 = vmatpush.bf16.msra.mxu0 %v580
        %621 = vmatpush.bf16.msra.mxu0 %v579
        %622 = vmatpush.bf16.msra.mxu0 %v578
        %623 = vmatmul.bf16.gmra.mxu0 %v469
        %v624 = vpop.f32.mrf.mxu0
        %v625 = vadd.f32 %v612, %v624
        %v626 = vpop.f32.mrf.mxu0
        %627 = vdwg.mxu0
        %v628 = vpack.c.bf16 %v625, %v625
        %v629 = vld [vmem:[#allocation8] sm:$0xf]
        %v630 = vld [vmem:[#allocation8 + $0x4] sm:$0xf]
        %v631 = vld [vmem:[#allocation8 + $0x8] sm:$0xf]
        %v632 = vld [vmem:[#allocation8 + $0xc] sm:$0xf]
        %v633 = vld [vmem:[#allocation8 + $0x10] sm:$0xf]
        %v634 = vld [vmem:[#allocation8 + $0x14] sm:$0xf]
        %v635 = vld [vmem:[#allocation8 + $0x18] sm:$0xf]
        %v636 = vld [vmem:[#allocation8 + $0x1c] sm:$0xf]
        %v637 = vld [vmem:[#allocation8 + $0x20] sm:$0xf]
        %v638 = vld [vmem:[#allocation8 + $0x24] sm:$0xf]
        %v639 = vld [vmem:[#allocation8 + $0x28] sm:$0xf]
        %v640 = vld [vmem:[#allocation8 + $0x2c] sm:$0xf]
        %v641 = vld [vmem:[#allocation8 + $0x30] sm:$0xf]
        %v642 = vld [vmem:[#allocation8 + $0x34] sm:$0xf]
        %v643 = vld [vmem:[#allocation8 + $0x38] sm:$0xf]
        %v644 = vld [vmem:[#allocation8 + $0x3c] sm:$0xf]
        %v645 = vld [vmem:[%s5] sm:$0x1]
        %v647 = vperm.slane %v645, 0
        %v665 = vunpack.c.l.b16 %v629
        %v666 = vunpack.c.l.b16 %v630
        %v667 = vunpack.c.l.b16 %v631
        %v668 = vunpack.c.l.b16 %v632
        %v669 = vunpack.c.l.b16 %v633
        %v670 = vunpack.c.l.b16 %v634
        %v671 = vunpack.c.l.b16 %v635
        %v672 = vunpack.c.l.b16 %v636
        %v673 = vunpack.c.l.b16 %v637
        %v674 = vunpack.c.l.b16 %v638
        %v675 = vunpack.c.l.b16 %v639
        %v676 = vunpack.c.l.b16 %v640
        %v677 = vunpack.c.l.b16 %v641
        %v678 = vunpack.c.l.b16 %v642
        %v679 = vunpack.c.l.b16 %v643
        %v680 = vunpack.c.l.b16 %v644
        %v681 = vpack.c.b16 %v666, %v665
        %v682 = vpack.c.b16 %v668, %v667
        %v683 = vpack.c.b16 %v670, %v669
        %v684 = vpack.c.b16 %v672, %v671
        %v685 = vpack.c.b16 %v674, %v673
        %v686 = vpack.c.b16 %v676, %v675
        %v687 = vpack.c.b16 %v678, %v677
        %v688 = vpack.c.b16 %v680, %v679
        %697 = vmatpush.bf16.msra.mxu0 %v688
        %698 = vmatpush.bf16.msra.mxu0 %v687
        %699 = vmatpush.bf16.msra.mxu0 %v686
        %700 = vmatpush.bf16.msra.mxu0 %v685
        %701 = vmatpush.bf16.msra.mxu0 %v684
        %702 = vmatpush.bf16.msra.mxu0 %v683
        %703 = vmatpush.bf16.msra.mxu0 %v682
        %704 = vmatpush.bf16.msra.mxu0 %v681
        %705 = vmatmul.bf16.gmra.mxu0 %v628
        %v706 = vpop.f32.mrf.mxu0
        %v707 = vadd.f32 %v647, %v706
        %v708 = vpop.f32.mrf.mxu0
        %709 = vdwg.mxu0
        %v710 = vmul.f32 %v707, 0.5
        %v711 = vmul.f32 %v707, 0.70710677
        %v712 = vand.u32 2147483647, %v711
        %v713 = vmul.f32 %v712, 0.3275911
        %v714 = vadd.f32 %v713, 1.0
        %v715 = vrcp.pop %v714
        %v716 = vmul.f32 %v715, 1.0614054
        %v717 = vadd.f32 %v716, -1.4531521
        %v718 = vmul.f32 %v717, %v715
        %v719 = vadd.f32 %v718, 1.4214138
        %v720 = vmul.f32 %v719, %v715
        %v721 = vadd.f32 %v720, -0.28449672
        %v722 = vmul.f32 %v721, %v715
        %v723 = vadd.f32 %v722, 0.2548296
        %v724 = vmul.f32 %v723, %v715
        %v725 = vsub.f32 0.0, %v712
        %v726 = vmul.f32 %v725, %v712
        %v727 = vmul.f32 %v726, 1.442695
        %v728 = vpow.pop %v727
        %v729 = vmul.f32 %v724, %v728
        %v730 = vsub.f32 1.0, %v729
        %vm731 = vcmp.ge.f32.partialorder %v711, 0.0
        %v732 = vsub.f32 0.0, %v730
        %v733 = vsel %vm731, %v730, %v732
        %v734 = vadd.f32 %v733, 1.0
        %v735 = vmul.f32 %v710, %v734
        %v736 = vpack.c.bf16 %v735, %v735
        %v737 = vld [vmem:[#allocation10] sm:$0xf]
        %v738 = vld [vmem:[#allocation10 + $0x4] sm:$0xf]
        %v739 = vld [vmem:[#allocation10 + $0x8] sm:$0xf]
        %v740 = vld [vmem:[#allocation10 + $0xc] sm:$0xf]
        %v741 = vld [vmem:[#allocation10 + $0x10] sm:$0xf]
        %v742 = vld [vmem:[#allocation10 + $0x14] sm:$0xf]
        %v743 = vld [vmem:[#allocation10 + $0x18] sm:$0xf]
        %v744 = vld [vmem:[#allocation10 + $0x1c] sm:$0xf]
        %v745 = vld [vmem:[#allocation10 + $0x20] sm:$0xf]
        %v746 = vld [vmem:[#allocation10 + $0x24] sm:$0xf]
        %v747 = vld [vmem:[#allocation10 + $0x28] sm:$0xf]
        %v748 = vld [vmem:[#allocation10 + $0x2c] sm:$0xf]
        %v749 = vld [vmem:[#allocation10 + $0x30] sm:$0xf]
        %v750 = vld [vmem:[#allocation10 + $0x34] sm:$0xf]
        %v751 = vld [vmem:[#allocation10 + $0x38] sm:$0xf]
        %v752 = vld [vmem:[#allocation10 + $0x3c] sm:$0xf]
        %v769 = vunpack.c.l.b16 %v737
        %v770 = vunpack.c.l.b16 %v738
        %v771 = vunpack.c.l.b16 %v739
        %v772 = vunpack.c.l.b16 %v740
        %v773 = vunpack.c.l.b16 %v741
        %v774 = vunpack.c.l.b16 %v742
        %v775 = vunpack.c.l.b16 %v743
        %v776 = vunpack.c.l.b16 %v744
        %v777 = vunpack.c.l.b16 %v745
        %v778 = vunpack.c.l.b16 %v746
        %v779 = vunpack.c.l.b16 %v747
        %v780 = vunpack.c.l.b16 %v748
        %v781 = vunpack.c.l.b16 %v749
        %v782 = vunpack.c.l.b16 %v750
        %v783 = vunpack.c.l.b16 %v751
        %v784 = vunpack.c.l.b16 %v752
        %v785 = vpack.c.b16 %v770, %v769
        %v786 = vpack.c.b16 %v772, %v771
        %v787 = vpack.c.b16 %v774, %v773
        %v788 = vpack.c.b16 %v776, %v775
        %v789 = vpack.c.b16 %v778, %v777
        %v790 = vpack.c.b16 %v780, %v779
        %v791 = vpack.c.b16 %v782, %v781
        %v792 = vpack.c.b16 %v784, %v783
        %801 = vmatpush.bf16.msra.mxu0 %v792
        %802 = vmatpush.bf16.msra.mxu0 %v791
        %803 = vmatpush.bf16.msra.mxu0 %v790
        %804 = vmatpush.bf16.msra.mxu0 %v789
        %805 = vmatpush.bf16.msra.mxu0 %v788
        %806 = vmatpush.bf16.msra.mxu0 %v787
        %807 = vmatpush.bf16.msra.mxu0 %v786
        %808 = vmatpush.bf16.msra.mxu0 %v785
        %809 = vmatmul.bf16.gmra.mxu0 %v736
        %v810 = vpop.f32.mrf.mxu0
        %v811 = vadd.f32 0.0, %v810
        %v812 = vpop.f32.mrf.mxu0
        %813 = vdwg.mxu0
        %v814 = vadd.f32 %v625, %v811
        %v815 = vld [vmem:[%s7] sm:$0x1]
        %v817 = vperm.slane %v815, 0
        %v819 = vadd.f32 %v814, %v817
        %v820 = vld [vmem:[%s408] sm:$0xff]
        %v821 = vadd.f32 %v819, %v820
        %822 = vadd.xlane.f32.xlu0 %v821
        %v823 = vpop.xlane.xlu0 %822
        %v824 = vrcp.pop 128.0
        %v825 = vmul.f32 128.0, %v824
        %v826 = vsub.f32 1.0, %v825
        %v827 = vmul.f32 %v824, %v826
        %v828 = vadd.f32 %v824, %v827
        %vm829 = vweird.f32 %v824
        %v830 = vsel %vm829, %v824, %v828
        %v831 = vmul.f32 %v823, %v830
        %v832 = vsub.f32 %v821, %v831
        %v833 = vmul.f32 %v832, %v832
        %834 = vadd.xlane.f32.xlu0 %v833
        %v835 = vpop.xlane.xlu0 %834
        %v836 = vmul.f32 %v835, %v830
        %v837 = vadd.f32 %v836, 1e-12
        %v838 = vrsqrt.pop %v837
        %v839 = vmul.f32 %v838, %v837
        %v840 = vmul.f32 %v839, %v838
        %v841 = vmul.f32 0.5, %v840
        %v842 = vsub.f32 1.5, %v841
        %v843 = vmul.f32 %v838, %v842
        %vm844 = vweird.f32 %v837
        %vm845 = vweird.f32 %v838
        %vm846 = vmor %vm844, %vm845
        %v847 = vsel %vm846, %v838, %v843
        %v848 = vmul.f32 %v832, %v847
        %v849 = vld [vmem:[%s8] sm:$0x1]
        %v851 = vperm.slane %v849, 0
        %v853 = vmul.f32 %v848, %v851
        %v854 = vld [vmem:[%s9] sm:$0x1]
        %v856 = vperm.slane %v854, 0
        %v858 = vadd.f32 %v853, %v856
        %859 = vst [vmem:[%s465] sm:$0xff] %v858
        %s860 = sand.u32 %s259, 1
        %s861 = scalar_lea.sflag [#allocation4], %s860
        %s862 = sand.u32 %s259, 1
        %s863 = smul.addr %s862, 8
        %s864 = scalar_lea.vmem [#allocation11], %s863
        // Predicated region
        $region81: #{adapter_bert_output.1} parent=59 // pred_check
          %p865 = pneg %p269
        $region82: #{adapter_bert_output.1} parent=59 // pred_check_branch
          %867 = sbr.rel (%p865) target = $region84
        $region83: #{adapter_bert_output.1} parent=59 // pred_region
          %869 = vsyncadd %s861, 0
          %s870 = smul.addr %s31, 8
          %s871 = scalar_lea.hbm %s10, %s870
          %s873 = sshll.u32 %s864, 4
          %s874 = int_to_ptr.vmem [resolvable:$true] %s873
          %s875 = sshll.u32 %s871, 4
          %s876 = int_to_ptr.hbm [resolvable:$true] %s875
          %878 = dma.vmem_to_hbm [thread:$0]  %s874, 128, %s876, %s861
        $region84: #{adapter_bert_output.1} parent=59 // pred_fallthru
          _
      $region60: #{adapter_bert_output.1} parent=5 // pred_fallthru
        _
      %p879 = scmp.le.s32.totalorder 2, %s26
      // Predicated region
      $region85: #{adapter_bert_output.1} parent=5 // pred_check
        %p880 = pneg %p879
      $region86: #{adapter_bert_output.1} parent=5 // pred_check_branch
        %882 = sbr.rel (%p880) target = $region88
      $region87: #{adapter_bert_output.1} parent=5 // pred_region
        %s883 = ssub.s32 %s26, 2
        // Predicated region
        $region89: #{adapter_bert_output.1} parent=87 // pred_check
          %p884 = pneg %p275
        $region90: #{adapter_bert_output.1} parent=87 // pred_check_branch
          %886 = sbr.rel (%p884) target = $region92
        $region91: #{adapter_bert_output.1} parent=87 // pred_region
          %s887 = sand.u32 %s260, 1
          %s888 = scalar_lea.sflag [#allocation4], %s887
          %s889 = sand.u32 %s260, 1
          %s890 = smul.addr %s889, 8
          %s891 = scalar_lea.vmem [#allocation11], %s890
          %893 = dma.done %s888, 128
        $region92: #{adapter_bert_output.1} parent=87 // pred_fallthru
          _
      $region88: #{adapter_bert_output.1} parent=5 // pred_fallthru
        _
    $region6: #{adapter_bert_output.1} parent=1 // loop_footer
      %s30 = sadd.s32 1, %s26
    $region7: #{adapter_bert_output.1} parent=1 // loop_footer_branch
      %25 = sbr.rel target = $region3
    $region8: #{adapter_bert_output.1} parent=1 // loop_exit
      _
    %894 = vsyncpa [#allocation3], 1
    %s895 = scalar_lea.sflag [#allocation3], 1
    %896 = vsyncpa %s895, 1
    %897 = vsyncpa [#allocation6], 1
    %s898 = scalar_lea.sflag [#allocation6], 1
    %899 = vsyncpa %s898, 1
    %900 = vsyncpa [#allocation9], 1
    %901 = vsyncpa [#allocation4], 1
    %s902 = scalar_lea.sflag [#allocation4], 1
    %903 = vsyncpa %s902, 1

</llo_original>
